<compile_context>
chip_gen: v7x
topology: tpu7x:2x2x1
jax: 0.10.0
libtpu: 0.0.40
codegen_flags: <defaults>
</compile_context>

<pallas_src>
import math
import jax
import jax.numpy as jnp
from jax.experimental import pallas as pl
from jax.experimental.pallas import tpu as pltpu


def _attention_kernel(x_ref, w_qkv_ref, b_qkv_ref, w_proj_ref, b_proj_ref,
                      o_ref, *, n_heads):
    # x_ref: (1, S, W) bf16; weights pre-transposed to (in, out) bf16.
    x = x_ref[0]                               # (S, W) bf16
    S, W = x.shape
    hd = W // n_heads
    scale = 1.0 / math.sqrt(hd)                # F.scaled_dot_product_attention default

    # Fused QKV projection: (S, W) @ (W, 3W) -> f32 accumulate, + bias.
    qkv = jnp.dot(x, w_qkv_ref[...],
                  preferred_element_type=jnp.float32) + b_qkv_ref[0]   # (S, 3W) f32

    # Split heads: (S, W) -> (H, S, hd). Scale folded into q once.
    q = (qkv[:, 0 * W:1 * W] * scale).reshape(S, n_heads, hd).swapaxes(0, 1)
    k = qkv[:, 1 * W:2 * W].reshape(S, n_heads, hd).swapaxes(0, 1)
    v = qkv[:, 2 * W:3 * W].reshape(S, n_heads, hd).swapaxes(0, 1)

    # Batched scores over all heads in one MXU stream: (H, S, S) f32.
    s = jnp.einsum("hqd,hkd->hqk",
                   q.astype(jnp.bfloat16), k.astype(jnp.bfloat16),
                   preferred_element_type=jnp.float32)

    # Causal mask (query row q attends to key col k <= q); large finite neg.
    row = jax.lax.broadcasted_iota(jnp.int32, (S, S), 0)
    col = jax.lax.broadcasted_iota(jnp.int32, (S, S), 1)
    causal = (row >= col)[None, :, :]          # (1, S, S) -> broadcast over heads
    s = jnp.where(causal, s, -1e30)

    # Softmax (numerically stable); divide via EUP approx reciprocal.
    m = jnp.max(s, axis=-1, keepdims=True)
    p = jnp.exp(s - m)
    denom = jnp.sum(p, axis=-1, keepdims=True)
    attn = p * pl.reciprocal(denom, approx=True)

    # Weighted values, all heads at once: (H, S, hd) f32.
    ctx = jnp.einsum("hqk,hkd->hqd",
                     attn.astype(jnp.bfloat16), v.astype(jnp.bfloat16),
                     preferred_element_type=jnp.float32)
    ctx = ctx.swapaxes(0, 1).reshape(S, W)     # (S, W)

    # Output projection, written directly to the output ref.
    o_ref[0] = (jnp.dot(ctx.astype(jnp.bfloat16), w_proj_ref[...],
                        preferred_element_type=jnp.float32)
                + b_proj_ref[0]).astype(o_ref.dtype)


def attention_forward(x, w_qkv, b_qkv, w_proj, b_proj, n_heads):
    """x: (B, S, W) float32. Weights in PyTorch (out, in) layout. Returns (B, S, W) f32."""
    B, S, W = x.shape
    assert W % n_heads == 0

    # Host-side one-time prep: transpose weights to (in, out) and cast to bf16.
    x_bf = x.astype(jnp.bfloat16)
    w_qkv_t = jnp.asarray(w_qkv.T, dtype=jnp.bfloat16)    # (W, 3W)
    w_proj_t = jnp.asarray(w_proj.T, dtype=jnp.bfloat16)  # (W, W)
    b_qkv_f = b_qkv.astype(jnp.float32)                   # (1, 3W)
    b_proj_f = b_proj.astype(jnp.float32)                 # (1, W)

    kernel = lambda *refs: _attention_kernel(*refs, n_heads=n_heads)

    # NOTE: at real model widths (W >= 128) the (1, S, W) output block is
    # lane-dense; at this toy W=32 it is inherently narrow.
    return pl.pallas_call(
        kernel,
        out_shape=jax.ShapeDtypeStruct((B, S, W), jnp.float32),
        grid_spec=pltpu.PrefetchScalarGridSpec(
            num_scalar_prefetch=0,
            grid=(B,),
            in_specs=[
                pl.BlockSpec((1, S, W), lambda b: (b, 0, 0)),       # x (bf16)
                pl.BlockSpec((W, 3 * W), lambda b: (0, 0)),         # w_qkv^T (bf16)
                pl.BlockSpec((1, 3 * W), lambda b: (0, 0)),         # b_qkv (f32)
                pl.BlockSpec((W, W), lambda b: (0, 0)),             # w_proj^T (bf16)
                pl.BlockSpec((1, W), lambda b: (0, 0)),             # b_proj (f32)
            ],
            out_specs=pl.BlockSpec((1, S, W), lambda b: (b, 0, 0)),
        ),
        compiler_params=pltpu.CompilerParams(
            dimension_semantics=("parallel",)),
    )(x_bf, w_qkv_t, b_qkv_f, w_proj_t, b_proj_f)


def _reference(x, w_qkv, b_qkv, w_proj, b_proj, n_heads):
    """Pure-JAX f32 reference mirroring the PyTorch forward (eval mode)."""
    B, S, W = x.shape
    hd = W // n_heads
    qkv = x @ w_qkv.T + b_qkv[0]
    q, k, v = qkv[..., :W], qkv[..., W:2 * W], qkv[..., 2 * W:]
    q = q.reshape(B, S, n_heads, hd).transpose(0, 2, 1, 3)
    k = k.reshape(B, S, n_heads, hd).transpose(0, 2, 1, 3)
    v = v.reshape(B, S, n_heads, hd).transpose(0, 2, 1, 3)
    scores = jnp.einsum("bhqd,bhkd->bhqk", q, k) / math.sqrt(hd)
    mask = jnp.tril(jnp.ones((S, S), dtype=bool))
    scores = jnp.where(mask, scores, -jnp.inf)
    attn = jax.nn.softmax(scores, axis=-1)
    ctx = jnp.einsum("bhqk,bhkd->bhqd", attn, v)
    ctx = ctx.transpose(0, 2, 1, 3).reshape(B, S, W)
    return ctx @ w_proj.T + b_proj[0]


if __name__ == "__main__":
    # Small shapes consistent with the module's forward.
    B, S, W = 2, 8, 32      # batch, seq_len, n_embeddings
    n_heads = 4

    key = jax.random.PRNGKey(0)
    kx, k1, k2, k3, k4 = jax.random.split(key, 5)

    x = jax.random.normal(kx, (B, S, W), dtype=jnp.float32)

    # Deterministic "Linear" parameters (PyTorch layout: weight (out, in)).
    bound = 1.0 / math.sqrt(W)
    w_qkv = jax.random.uniform(k1, (3 * W, W), jnp.float32, -bound, bound)
    b_qkv = jax.random.uniform(k2, (1, 3 * W), jnp.float32, -bound, bound)
    w_proj = jax.random.uniform(k3, (W, W), jnp.float32, -bound, bound)
    b_proj = jax.random.uniform(k4, (1, W), jnp.float32, -bound, bound)

    out = attention_forward(x, w_qkv, b_qkv, w_proj, b_proj, n_heads)
    out = jax.block_until_ready(out)

    # Compare against the f32 reference on the same bf16-rounded activations/
    # weights (biases stay f32 in both), with a bf16-appropriate tolerance.
    rnd = lambda a: a.astype(jnp.bfloat16).astype(jnp.float32)
    ref = _reference(rnd(x), rnd(w_qkv), b_qkv, rnd(w_proj), b_proj, n_heads)

    assert out.shape == (B, S, W)
    assert jnp.allclose(out, ref, atol=2e-2, rtol=2e-2), (
        float(jnp.max(jnp.abs(out - ref))))

    print("KERNEL_OK")
</pallas_src>

<mosaic_0001>
module attributes {stable_mosaic.version = 11 : i64} {
  func.func @_lambda_(%arg0: i32, %arg1: memref<1x8x32xbf16, #tpu.memory_space<vmem>>, %arg2: memref<32x96xbf16, #tpu.memory_space<vmem>>, %arg3: memref<1x96xf32, #tpu.memory_space<vmem>>, %arg4: memref<32x32xbf16, #tpu.memory_space<vmem>>, %arg5: memref<1x32xf32, #tpu.memory_space<vmem>>, %arg6: memref<1x8x32xf32, #tpu.memory_space<vmem>>) attributes {dimension_semantics = [#tpu.dimension_semantics<parallel>], iteration_bounds = array<i64: 2>, scalar_prefetch = 0 : i64, scratch_operands = 0 : i64, tpu.core_type = #tpu.core_type<tc>, window_params = [{transform_indices = @transform_0, window_bounds = array<i64: 1, 8, 32>}, {pipeline_mode = #tpu.pipeline_mode<synchronous>, transform_indices = @transform_1, window_bounds = array<i64: 32, 96>}, {pipeline_mode = #tpu.pipeline_mode<synchronous>, transform_indices = @transform_2, window_bounds = array<i64: 1, 96>}, {pipeline_mode = #tpu.pipeline_mode<synchronous>, transform_indices = @transform_3, window_bounds = array<i64: 32, 32>}, {pipeline_mode = #tpu.pipeline_mode<synchronous>, transform_indices = @transform_4, window_bounds = array<i64: 1, 32>}, {transform_indices = @transform_5, window_bounds = array<i64: 1, 8, 32>}]} {
    %c0 = arith.constant 0 : index
    %c0_0 = arith.constant 0 : index
    %c0_1 = arith.constant 0 : index
    %0 = vector.load %arg1[%c0, %c0_0, %c0_1] : memref<1x8x32xbf16, #tpu.memory_space<vmem>>, vector<1x8x32xbf16>
    %1 = vector.shape_cast %0 : vector<1x8x32xbf16> to vector<8x32xbf16>
    %c0_2 = arith.constant 0 : index
    %c0_3 = arith.constant 0 : index
    %2 = vector.load %arg2[%c0_2, %c0_3] : memref<32x96xbf16, #tpu.memory_space<vmem>>, vector<32x96xbf16>
    %cst = arith.constant dense<0.000000e+00> : vector<8x96xf32>
    %3 = tpu.matmul %1, %2, %cst {dimension_numbers = #tpu.dot_dimension_numbers<[1], [0], [0], [1], [0, 0, 1, 1], [], []>} : vector<8x32xbf16>, vector<32x96xbf16>, vector<8x96xf32> -> vector<8x96xf32>
    %c0_4 = arith.constant 0 : index
    %c0_5 = arith.constant 0 : index
    %4 = vector.load %arg3[%c0_4, %c0_5] : memref<1x96xf32, #tpu.memory_space<vmem>>, vector<1x96xf32>
    %5 = vector.shape_cast %4 : vector<1x96xf32> to vector<96xf32>
    %6 = vector.shape_cast %5 : vector<96xf32> to vector<1x96xf32>
    %7 = vector.broadcast %6 : vector<1x96xf32> to vector<8x96xf32>
    %8 = arith.addf %3, %7 : vector<8x96xf32>
    %9 = vector.extract_strided_slice %8 {offsets = [0, 0], sizes = [8, 32], strides = [1, 1]} : vector<8x96xf32> to vector<8x32xf32>
    %cst_6 = arith.constant 0.353553385 : f32
    %10 = vector.broadcast %cst_6 : f32 to vector<8x32xf32>
    %11 = arith.mulf %9, %10 : vector<8x32xf32>
    %12 = vector.shape_cast %11 : vector<8x32xf32> to vector<8x4x8xf32>
    %13 = tpu.transpose %12, [1, 0, 2] : vector<8x4x8xf32> -> vector<4x8x8xf32>
    %14 = vector.extract_strided_slice %8 {offsets = [0, 32], sizes = [8, 32], strides = [1, 1]} : vector<8x96xf32> to vector<8x32xf32>
    %15 = vector.shape_cast %14 : vector<8x32xf32> to vector<8x4x8xf32>
    %16 = tpu.transpose %15, [1, 0, 2] : vector<8x4x8xf32> -> vector<4x8x8xf32>
    %17 = vector.extract_strided_slice %8 {offsets = [0, 64], sizes = [8, 32], strides = [1, 1]} : vector<8x96xf32> to vector<8x32xf32>
    %18 = vector.shape_cast %17 : vector<8x32xf32> to vector<8x4x8xf32>
    %19 = tpu.transpose %18, [1, 0, 2] : vector<8x4x8xf32> -> vector<4x8x8xf32>
    %20 = arith.truncf %13 : vector<4x8x8xf32> to vector<4x8x8xbf16>
    %21 = arith.truncf %16 : vector<4x8x8xf32> to vector<4x8x8xbf16>
    "tpu.trace_start"() <{level = 10 : i32, message = "hqd,hkd->hqk"}> : () -> ()
    %cst_7 = arith.constant dense<0.000000e+00> : vector<4x8x8xf32>
    %22 = tpu.matmul %20, %21, %cst_7 {dimension_numbers = #tpu.dot_dimension_numbers<[2], [2], [1], [1], [0, 0, 0, 1, 1, 1], [0], [0]>} : vector<4x8x8xbf16>, vector<4x8x8xbf16>, vector<4x8x8xf32> -> vector<4x8x8xf32>
    "tpu.trace_stop"() : () -> ()
    %23 = tpu.iota {dimensions = array<i32: 0>} : vector<8x8xi32>
    %24 = tpu.iota {dimensions = array<i32: 1>} : vector<8x8xi32>
    %25 = arith.cmpi sge, %23, %24 : vector<8x8xi32>
    %26 = vector.shape_cast %25 : vector<8x8xi1> to vector<1x8x8xi1>
    %cst_8 = arith.constant -1.000000e+30 : f32
    %27 = vector.shape_cast %26 : vector<1x8x8xi1> to vector<1x8x8xi1>
    %28 = vector.broadcast %27 : vector<1x8x8xi1> to vector<4x8x8xi1>
    %29 = vector.broadcast %cst_8 : f32 to vector<4x8x8xf32>
    %30 = arith.select %28, %22, %29 : vector<4x8x8xi1>, vector<4x8x8xf32>
    %cst_9 = arith.constant dense<0xFF800000> : vector<4x8xf32>
    %31 = vector.multi_reduction <maximumf>, %30, %cst_9 [2] : vector<4x8x8xf32> to vector<4x8xf32>
    %32 = vector.shape_cast %31 : vector<4x8xf32> to vector<4x8x1xf32>
    %33 = vector.broadcast %32 : vector<4x8x1xf32> to vector<4x8x8xf32>
    %34 = arith.subf %30, %33 : vector<4x8x8xf32>
    %35 = math.exp %34 : vector<4x8x8xf32>
    %cst_10 = arith.constant dense<0.000000e+00> : vector<4x8xf32>
    %36 = vector.multi_reduction <add>, %35, %cst_10 [2] : vector<4x8x8xf32> to vector<4x8xf32>
    %37 = vector.shape_cast %36 : vector<4x8xf32> to vector<4x8x1xf32>
    %38 = tpu.reciprocal %37 {approx = true} : vector<4x8x1xf32> -> vector<4x8x1xf32>
    %39 = vector.broadcast %38 : vector<4x8x1xf32> to vector<4x8x8xf32>
    %40 = arith.mulf %35, %39 : vector<4x8x8xf32>
    %41 = arith.truncf %40 : vector<4x8x8xf32> to vector<4x8x8xbf16>
    %42 = arith.truncf %19 : vector<4x8x8xf32> to vector<4x8x8xbf16>
    "tpu.trace_start"() <{level = 10 : i32, message = "hqk,hkd->hqd"}> : () -> ()
    %cst_11 = arith.constant dense<0.000000e+00> : vector<4x8x8xf32>
    %43 = tpu.matmul %41, %42, %cst_11 {dimension_numbers = #tpu.dot_dimension_numbers<[2], [1], [1], [2], [0, 0, 0, 1, 1, 2], [0], [0]>} : vector<4x8x8xbf16>, vector<4x8x8xbf16>, vector<4x8x8xf32> -> vector<4x8x8xf32>
    "tpu.trace_stop"() : () -> ()
    %44 = tpu.transpose %43, [1, 0, 2] : vector<4x8x8xf32> -> vector<8x4x8xf32>
    %45 = vector.shape_cast %44 : vector<8x4x8xf32> to vector<8x32xf32>
    %46 = arith.truncf %45 : vector<8x32xf32> to vector<8x32xbf16>
    %c0_12 = arith.constant 0 : index
    %c0_13 = arith.constant 0 : index
    %47 = vector.load %arg4[%c0_12, %c0_13] : memref<32x32xbf16, #tpu.memory_space<vmem>>, vector<32x32xbf16>
    %cst_14 = arith.constant dense<0.000000e+00> : vector<8x32xf32>
    %48 = tpu.matmul %46, %47, %cst_14 {dimension_numbers = #tpu.dot_dimension_numbers<[1], [0], [0], [1], [0, 0, 1, 1], [], []>} : vector<8x32xbf16>, vector<32x32xbf16>, vector<8x32xf32> -> vector<8x32xf32>
    %c0_15 = arith.constant 0 : index
    %c0_16 = arith.constant 0 : index
    %49 = vector.load %arg5[%c0_15, %c0_16] : memref<1x32xf32, #tpu.memory_space<vmem>>, vector<1x32xf32>
    %50 = vector.shape_cast %49 : vector<1x32xf32> to vector<32xf32>
    %51 = vector.shape_cast %50 : vector<32xf32> to vector<1x32xf32>
    %52 = vector.broadcast %51 : vector<1x32xf32> to vector<8x32xf32>
    %53 = arith.addf %48, %52 : vector<8x32xf32>
    %c0_17 = arith.constant 0 : index
    %c0_18 = arith.constant 0 : index
    %c0_19 = arith.constant 0 : index
    %54 = vector.load %arg6[%c0_17, %c0_18, %c0_19] : memref<1x8x32xf32, #tpu.memory_space<vmem>>, vector<1x8x32xf32>
    %55 = vector.shape_cast %54 : vector<1x8x32xf32> to vector<8x32xf32>
    %56 = vector.shape_cast %53 : vector<8x32xf32> to vector<1x8x32xf32>
    tpu.vector_store %arg6[%c0_17, %c0_18, %c0_19], %56 {strides = array<i32>} : memref<1x8x32xf32, #tpu.memory_space<vmem>>, vector<1x8x32xf32>,
    return
  }
  func.func @transform_0(%arg0: i32) -> (i32, i32, i32) {
    %c0_i32 = arith.constant 0 : i32
    %c0_i32_0 = arith.constant 0 : i32
    %c0_i32_1 = arith.constant 0 : i32
    return %arg0, %c0_i32, %c0_i32_0 : i32, i32, i32
  }
  func.func @transform_1(%arg0: i32) -> (i32, i32) {
    %c0_i32 = arith.constant 0 : i32
    %c0_i32_0 = arith.constant 0 : i32
    %c0_i32_1 = arith.constant 0 : i32
    return %c0_i32, %c0_i32_0 : i32, i32
  }
  func.func @transform_2(%arg0: i32) -> (i32, i32) {
    %c0_i32 = arith.constant 0 : i32
    %c0_i32_0 = arith.constant 0 : i32
    %c0_i32_1 = arith.constant 0 : i32
    return %c0_i32, %c0_i32_0 : i32, i32
  }
  func.func @transform_3(%arg0: i32) -> (i32, i32) {
    %c0_i32 = arith.constant 0 : i32
    %c0_i32_0 = arith.constant 0 : i32
    %c0_i32_1 = arith.constant 0 : i32
    return %c0_i32, %c0_i32_0 : i32, i32
  }
  func.func @transform_4(%arg0: i32) -> (i32, i32) {
    %c0_i32 = arith.constant 0 : i32
    %c0_i32_0 = arith.constant 0 : i32
    %c0_i32_1 = arith.constant 0 : i32
    return %c0_i32, %c0_i32_0 : i32, i32
  }
  func.func @transform_5(%arg0: i32) -> (i32, i32, i32) {
    %c0_i32 = arith.constant 0 : i32
    %c0_i32_0 = arith.constant 0 : i32
    %c0_i32_1 = arith.constant 0 : i32
    return %arg0, %c0_i32, %c0_i32_0 : i32, i32, i32
  }
}

</mosaic_0001>

<llo_original>
// kernel: tpu_custom_call.1
$region0: #{tpu_custom_call.1}
  #allocation0 [shape = 'u32[]', space=smem, size = 0x4, offset = 0x4, fixed_abs, tag = 'smem constant byte address 0x4 - core index']
  #allocation1 [shape = 'u32[144,128]{1,0:T(1,128)}', space=vmem, size = 0x12000, scoped, tag = 'internal scratch']
  %s0 = inlined_call_operand.hbm [shape: bf16[2,8,32], index: 0, kind: input, shape index: {}]
  %s1 = inlined_call_operand.hbm [shape: bf16[32,96], index: 1, kind: input, shape index: {}]
  %s2 = inlined_call_operand.vmem [shape: f32[1,96], index: 2, kind: input, shape index: {}]
  %s3 = inlined_call_operand.hbm [shape: bf16[32,32], index: 3, kind: input, shape index: {}]
  %s4 = inlined_call_operand.vmem [shape: f32[1,32], index: 4, kind: input, shape index: {}]
  %s5 = inlined_call_operand.hbm [shape: f32[2,8,32], index: 5, kind: output, shape index: {}]
  %s6 = sld [smem:[#allocation0]]
  $region65: #{tpu_custom_call.1} parent=0
    _
  %s8 = ssub.s32 1, %s6
  %s9 = scalar_select 0, %s8, %s6
  $region1: #{tpu_custom_call.1} parent=0
    #allocation2 [shape = 'u8[4096]{0}', space=vmem, size = 0x1000, scoped, tag = 'input window, operand 0']
    #allocation3 [shape = 's32[2]{0}', space=sflag, size = 0x8, scoped, tag = 'scoped memory for tpu_custom_call.1']
    #allocation4 [shape = 's32[2]{0}', space=sflag, size = 0x8, scoped, tag = 'scoped memory for tpu_custom_call.1']
    #allocation5 [shape = 'u8[8192]{0}', space=vmem, size = 0x2000, scoped, tag = 'input window, operand 1, single buffered']
    #allocation6 [shape = 's32[1]{0}', space=sflag, size = 0x4, scoped, tag = 'scoped memory for tpu_custom_call.1']
    #allocation7 [shape = 'u8[8192]{0}', space=vmem, size = 0x2000, scoped, tag = 'input window, operand 3, single buffered']
    #allocation8 [shape = 'u8[8192]{0}', space=vmem, size = 0x2000, scoped, tag = 'output window, operand 0']
    %10 = vsyncpa [#allocation3], 0
    %s11 = scalar_lea.sflag [#allocation3], 1
    %12 = vsyncpa %s11, 0
    %13 = vsyncpa [#allocation6], 0
    %14 = vsyncpa [#allocation4], 0
    %s15 = scalar_lea.sflag [#allocation4], 1
    %16 = vsyncpa %s15, 0
    loop: start=0, step=1, limit=4
    $region2: #{tpu_custom_call.1} parent=1 // loop_pre_header
      _
    $region3: #{tpu_custom_call.1} parent=1 // loop_header
      %s18 = sphi 0, %s22
      %p19 = scmp.ge.s32.totalorder %s18, 4
      %s28 = sphi 0, %s30
      %s31 = sphi 0, %s28
      %s32 = sphi 0, %s31
      %s48 = sphi 0, %s32
      %s52 = sphi 0, %s52
      %s54 = sphi 0, %s52
      %s55 = sphi 0, %s54
      %s69 = sphi 0, %s55
      %s73 = sphi 0, %s73
      %s75 = sphi 0, %s73
      %s76 = sphi 0, %s75
      %s90 = sphi 0, %s76
      %s94 = sphi 0, %s94
      %s96 = sphi 0, %s94
      %s97 = sphi 0, %s96
      %s111 = sphi 0, %s97
      %s115 = sphi 0, %s115
      %s117 = sphi 0, %s115
      %s118 = sphi 0, %s117
      %s132 = sphi 0, %s118
      %s138 = sphi 0, %s140
      %s141 = sphi 0, %s138
      %s142 = sphi 0, %s141
      %s158 = sphi 0, %s142
    $region4: #{tpu_custom_call.1} parent=1 // loop_header_branch
      %21 = sbr.rel (%p19) target = $region8
    $region5: #{tpu_custom_call.1} parent=1 // loop_body
      %s23 = ssub.s32 %s18, 1
      %s24 = ssub.s32 %s18, 2
      %s25 = sadd.s32 %s18, 1
      %s26 = ssub.s32 %s18, %s25
      %p27 = scmp.eq.s32.totalorder %s26, 0
      %s29 = sadd.s32 %s28, 1
      %s30 = scalar_select %p27, %s28, %s29
      %p33 = pneg %p27
      %p34 = scmp.eq.s32.totalorder %s18, 1
      %p35 = por %p33, %p34
      %p36 = scmp.ne.s32.totalorder %s28, %s31
      %p37 = scmp.eq.s32.totalorder %s18, 0
      %p38 = por %p36, %p37
      %p39 = scmp.ne.s32.totalorder %s28, %s31
      %p40 = scmp.eq.s32.totalorder %s23, 1
      %p41 = por %p39, %p40
      %p42 = scmp.ne.s32.totalorder %s31, %s32
      %p43 = scmp.eq.s32.totalorder %s23, 0
      %p44 = por %p42, %p43
      %p45 = scmp.ne.s32.totalorder %s31, %s32
      %p46 = scmp.eq.s32.totalorder %s24, 1
      %p47 = por %p45, %p46
      %p49 = scmp.ne.s32.totalorder %s32, %s48
      %p50 = scmp.eq.s32.totalorder %s24, 0
      %p51 = por %p49, %p50
      %s53 = sadd.s32 %s52, 1
      %p56 = scmp.eq.s32.totalorder %s18, 1
      %p57 = scmp.ne.s32.totalorder %s52, %s54
      %p58 = scmp.eq.s32.totalorder %s18, 0
      %p59 = por %p57, %p58
      %p60 = scmp.ne.s32.totalorder %s52, %s54
      %p61 = scmp.eq.s32.totalorder %s23, 1
      %p62 = por %p60, %p61
      %p63 = scmp.ne.s32.totalorder %s54, %s55
      %p64 = scmp.eq.s32.totalorder %s23, 0
      %p65 = por %p63, %p64
      %p66 = scmp.ne.s32.totalorder %s54, %s55
      %p67 = scmp.eq.s32.totalorder %s24, 1
      %p68 = por %p66, %p67
      %p70 = scmp.ne.s32.totalorder %s55, %s69
      %p71 = scmp.eq.s32.totalorder %s24, 0
      %p72 = por %p70, %p71
      %s74 = sadd.s32 %s73, 1
      %p77 = scmp.eq.s32.totalorder %s18, 1
      %p78 = scmp.ne.s32.totalorder %s73, %s75
      %p79 = scmp.eq.s32.totalorder %s18, 0
      %p80 = por %p78, %p79
      %p81 = scmp.ne.s32.totalorder %s73, %s75
      %p82 = scmp.eq.s32.totalorder %s23, 1
      %p83 = por %p81, %p82
      %p84 = scmp.ne.s32.totalorder %s75, %s76
      %p85 = scmp.eq.s32.totalorder %s23, 0
      %p86 = por %p84, %p85
      %p87 = scmp.ne.s32.totalorder %s75, %s76
      %p88 = scmp.eq.s32.totalorder %s24, 1
      %p89 = por %p87, %p88
      %p91 = scmp.ne.s32.totalorder %s76, %s90
      %p92 = scmp.eq.s32.totalorder %s24, 0
      %p93 = por %p91, %p92
      %s95 = sadd.s32 %s94, 1
      %p98 = scmp.eq.s32.totalorder %s18, 1
      %p99 = scmp.ne.s32.totalorder %s94, %s96
      %p100 = scmp.eq.s32.totalorder %s18, 0
      %p101 = por %p99, %p100
      %p102 = scmp.ne.s32.totalorder %s94, %s96
      %p103 = scmp.eq.s32.totalorder %s23, 1
      %p104 = por %p102, %p103
      %p105 = scmp.ne.s32.totalorder %s96, %s97
      %p106 = scmp.eq.s32.totalorder %s23, 0
      %p107 = por %p105, %p106
      %p108 = scmp.ne.s32.totalorder %s96, %s97
      %p109 = scmp.eq.s32.totalorder %s24, 1
      %p110 = por %p108, %p109
      %p112 = scmp.ne.s32.totalorder %s97, %s111
      %p113 = scmp.eq.s32.totalorder %s24, 0
      %p114 = por %p112, %p113
      %s116 = sadd.s32 %s115, 1
      %p119 = scmp.eq.s32.totalorder %s18, 1
      %p120 = scmp.ne.s32.totalorder %s115, %s117
      %p121 = scmp.eq.s32.totalorder %s18, 0
      %p122 = por %p120, %p121
      %p123 = scmp.ne.s32.totalorder %s115, %s117
      %p124 = scmp.eq.s32.totalorder %s23, 1
      %p125 = por %p123, %p124
      %p126 = scmp.ne.s32.totalorder %s117, %s118
      %p127 = scmp.eq.s32.totalorder %s23, 0
      %p128 = por %p126, %p127
      %p129 = scmp.ne.s32.totalorder %s117, %s118
      %p130 = scmp.eq.s32.totalorder %s24, 1
      %p131 = por %p129, %p130
      %p133 = scmp.ne.s32.totalorder %s118, %s132
      %p134 = scmp.eq.s32.totalorder %s24, 0
      %p135 = por %p133, %p134
      %s136 = ssub.s32 %s18, %s25
      %p137 = scmp.eq.s32.totalorder %s136, 0
      %s139 = sadd.s32 %s138, 1
      %s140 = scalar_select %p137, %s138, %s139
      %p143 = pneg %p137
      %p144 = scmp.eq.s32.totalorder %s18, 1
      %p145 = por %p143, %p144
      %p146 = scmp.ne.s32.totalorder %s138, %s141
      %p147 = scmp.eq.s32.totalorder %s18, 0
      %p148 = por %p146, %p147
      %p149 = scmp.ne.s32.totalorder %s138, %s141
      %p150 = scmp.eq.s32.totalorder %s23, 1
      %p151 = por %p149, %p150
      %p152 = scmp.ne.s32.totalorder %s141, %s142
      %p153 = scmp.eq.s32.totalorder %s23, 0
      %p154 = por %p152, %p153
      %p155 = scmp.ne.s32.totalorder %s141, %s142
      %p156 = scmp.eq.s32.totalorder %s24, 1
      %p157 = por %p155, %p156
      %p159 = scmp.ne.s32.totalorder %s142, %s158
      %p160 = scmp.eq.s32.totalorder %s24, 0
      %p161 = por %p159, %p160
      %p162 = scmp.le.s32.totalorder 1, %s18
      %p163 = scmp.lt.s32.totalorder %s18, 3
      %p164 = pnand %p162, %p163
      %p165 = pneg %p164
      // Predicated region
      $region9: #{tpu_custom_call.1} parent=5 // pred_check
        _
      $region10: #{tpu_custom_call.1} parent=5 // pred_check_branch
        %167 = sbr.rel (%p164) target = $region12
      $region11: #{tpu_custom_call.1} parent=5 // pred_region
        %s168 = ssub.s32 %s18, 1
        // Predicated region
        $region13: #{tpu_custom_call.1} parent=11 // pred_check
          %p169 = pneg %p65
        $region14: #{tpu_custom_call.1} parent=11 // pred_check_branch
          %171 = sbr.rel (%p169) target = $region16
        $region15: #{tpu_custom_call.1} parent=11 // pred_region
          %s173 = ssub.s32 256, 256
          %174 = vsyncadd [#allocation6], %s173
          %s175 = sshll.u32 [#allocation5], 4
          %s176 = int_to_ptr.vmem [resolvable:$true] %s175
          %181 = dma.hbm_to_vmem [thread:$0]  %s1, 256, %s176, [#allocation6], 64, 64, 4
        $region16: #{tpu_custom_call.1} parent=11 // pred_fallthru
          _
        // Predicated region
        $region17: #{tpu_custom_call.1} parent=11 // pred_check
          %p182 = pneg %p86
        $region18: #{tpu_custom_call.1} parent=11 // pred_check_branch
          %184 = sbr.rel (%p182) target = $region20
        $region19: #{tpu_custom_call.1} parent=11 // pred_region
          _
        $region20: #{tpu_custom_call.1} parent=11 // pred_fallthru
          _
        // Predicated region
        $region21: #{tpu_custom_call.1} parent=11 // pred_check
          %p185 = pneg %p107
        $region22: #{tpu_custom_call.1} parent=11 // pred_check_branch
          %187 = sbr.rel (%p185) target = $region24
        $region23: #{tpu_custom_call.1} parent=11 // pred_region
          %s189 = ssub.s32 256, 256
          %190 = vsyncadd [#allocation6], %s189
          %s191 = sshll.u32 [#allocation7], 4
          %s192 = int_to_ptr.vmem [resolvable:$true] %s191
          %197 = dma.hbm_to_vmem [thread:$0]  %s3, 256, %s192, [#allocation6], 64, 64, 4
        $region24: #{tpu_custom_call.1} parent=11 // pred_fallthru
          _
        // Predicated region
        $region25: #{tpu_custom_call.1} parent=11 // pred_check
          %p198 = pneg %p128
        $region26: #{tpu_custom_call.1} parent=11 // pred_check_branch
          %200 = sbr.rel (%p198) target = $region28
        $region27: #{tpu_custom_call.1} parent=11 // pred_region
          _
        $region28: #{tpu_custom_call.1} parent=11 // pred_fallthru
          _
      $region12: #{tpu_custom_call.1} parent=5 // pred_fallthru
        _
      %p201 = scmp.lt.s32.totalorder %s18, 2
      // Predicated region
      $region29: #{tpu_custom_call.1} parent=5 // pred_check
        %p202 = pneg %p201
      $region30: #{tpu_custom_call.1} parent=5 // pred_check_branch
        %204 = sbr.rel (%p202) target = $region32
      $region31: #{tpu_custom_call.1} parent=5 // pred_region
        // Predicated region
        $region33: #{tpu_custom_call.1} parent=31 // pred_check
          %p205 = pneg %p38
        $region34: #{tpu_custom_call.1} parent=31 // pred_check_branch
          %207 = sbr.rel (%p205) target = $region36
        $region35: #{tpu_custom_call.1} parent=31 // pred_region
          %s208 = sand.u32 %s28, 1
          %s209 = scalar_lea.sflag [#allocation3], %s208
          %s210 = sand.u32 %s28, 1
          %s211 = smul.addr %s210, 4
          %s212 = scalar_lea.vmem [#allocation2], %s211
          %s214 = ssub.s32 64, 64
          %215 = vsyncadd %s209, %s214
          %s216 = smul.addr %s18, 64
          %s217 = scalar_lea.hbm %s0, %s216
          %s219 = sshll.u32 %s212, 4
          %s220 = int_to_ptr.vmem [resolvable:$true] %s219
          %222 = dma.hbm_to_vmem [thread:$0]  %s217, 64, %s220, %s209
        $region36: #{tpu_custom_call.1} parent=31 // pred_fallthru
          _
      $region32: #{tpu_custom_call.1} parent=5 // pred_fallthru
        _
      %p223 = scmp.le.s32.totalorder 1, %s18
      %p224 = scmp.lt.s32.totalorder %s18, 3
      %p225 = pnand %p223, %p224
      %p226 = pneg %p225
      // Predicated region
      $region37: #{tpu_custom_call.1} parent=5 // pred_check
        _
      $region38: #{tpu_custom_call.1} parent=5 // pred_check_branch
        %228 = sbr.rel (%p225) target = $region40
      $region39: #{tpu_custom_call.1} parent=5 // pred_region
        %s229 = ssub.s32 %s18, 1
        %s230 = sand.u32 %s31, 1
        %s231 = scalar_lea.sflag [#allocation3], %s230
        %s232 = sand.u32 %s31, 1
        %s233 = smul.addr %s232, 4
        %s234 = scalar_lea.vmem [#allocation2], %s233
        // Predicated region
        $region41: #{tpu_custom_call.1} parent=39 // pred_check
          %p235 = pneg %p44
        $region42: #{tpu_custom_call.1} parent=39 // pred_check_branch
          %237 = sbr.rel (%p235) target = $region44
        $region43: #{tpu_custom_call.1} parent=39 // pred_region
          %238 = dma.done %s231, 64
        $region44: #{tpu_custom_call.1} parent=39 // pred_fallthru
          _
        // Predicated region
        $region45: #{tpu_custom_call.1} parent=39 // pred_check
          %p239 = pneg %p65
        $region46: #{tpu_custom_call.1} parent=39 // pred_check_branch
          %241 = sbr.rel (%p239) target = $region48
        $region47: #{tpu_custom_call.1} parent=39 // pred_region
          %242 = dma.done [#allocation6], 256
        $region48: #{tpu_custom_call.1} parent=39 // pred_fallthru
          _
        // Predicated region
        $region49: #{tpu_custom_call.1} parent=39 // pred_check
          %p243 = pneg %p107
        $region50: #{tpu_custom_call.1} parent=39 // pred_check_branch
          %245 = sbr.rel (%p243) target = $region52
        $region51: #{tpu_custom_call.1} parent=39 // pred_region
          %246 = dma.done [#allocation6], 256
        $region52: #{tpu_custom_call.1} parent=39 // pred_fallthru
          _
        %s247 = sand.u32 %s31, 1
        %s248 = scalar_lea.sflag [#allocation3], %s247
        %s249 = sand.u32 %s31, 1
        %s250 = smul.addr %s249, 4
        %s251 = scalar_lea.vmem [#allocation2], %s250
        %p252 = pneg %p44
        %p253 = pneg %p41
        %p254 = pneg %p65
        %p255 = pneg %p62
        %p256 = pneg %p86
        %p257 = pneg %p83
        %p258 = pneg %p107
        %p259 = pneg %p104
        %p260 = pneg %p128
        %p261 = pneg %p125
        %p262 = pneg %p154
        %p263 = pneg %p151
        %s264 = sand.u32 %s141, 1
        %s265 = scalar_lea.sflag [#allocation4], %s264
        %s266 = sand.u32 %s141, 1
        %s267 = smul.addr %s266, 8
        %s268 = scalar_lea.vmem [#allocation8], %s267
        %v270 = vld [vmem:[%s234] sm:$0xf]
        %v271 = vld [vmem:[#allocation5] sm:$0xf]
        %v272 = vld [vmem:[#allocation5 + $0x4] sm:$0xf]
        %v273 = vld [vmem:[#allocation5 + $0x8] sm:$0xf]
        %v274 = vld [vmem:[#allocation5 + $0xc] sm:$0xf]
        %v275 = vld [vmem:[%s2] sm:$0x1]
        %v277 = vlaneseq
        %v278 = vshrl.u32 %v277, 7
        %v279 = vsub.s32 0, %v278
        %v280 = vrot.slane %v275, %v279
        %v286 = vunpack.c.l.b16 %v271
        %v287 = vunpack.c.l.b16 %v272
        %v288 = vunpack.c.l.b16 %v273
        %v289 = vunpack.c.l.b16 %v274
        %v290 = vpack.c.b16 %v287, %v286
        %v291 = vpack.c.b16 %v289, %v288
        %vm294 = vcmask 261120
        %v296 = vsel %vm294, %v270, 0
        %298 = vmatprep.subr.bf16.mxu0 0
        %299 = vmatpush1.bf16.msra.mxu0 %v290
        %300 = vmatprep.subr.bf16.mxu0 0
        %301 = vmatpush1.bf16.msra.mxu0 %v291
        %302 = vmatprep.subr.bf16.mxu0 0
        %303 = vmatpush1.bf16.msra.mxu0 0
        %304 = vmatprep.subr.bf16.mxu0 0
        %305 = vmatpush1.bf16.msra.mxu0 0
        %306 = vmatprep.subr.bf16.mxu0 0
        %307 = vmatpush1.bf16.msra.mxu0 0
        %308 = vmatprep.subr.bf16.mxu0 0
        %309 = vmatpush1.bf16.msra.mxu0 0
        %310 = vmatprep.subr.bf16.mxu0 0
        %311 = vmatpush1.bf16.msra.mxu0 0
        %312 = vmatprep.subr.bf16.mxu0 0
        %313 = vmatpush1.bf16.msra.mxu0 0
        %314 = vmatprep.subr.bf16.mxu0 0
        %315 = vmatpush1.bf16.msra.mxu0 0
        %316 = vmatprep.subr.bf16.mxu0 0
        %317 = vmatpush1.bf16.msra.mxu0 0
        %318 = vmatprep.subr.bf16.mxu0 0
        %319 = vmatpush1.bf16.msra.mxu0 0
        %320 = vmatprep.subr.bf16.mxu0 0
        %321 = vmatpush1.bf16.msra.mxu0 0
        %322 = vmatprep.subr.bf16.mxu0 0
        %323 = vmatpush1.bf16.msra.mxu0 0
        %324 = vmatprep.subr.bf16.mxu0 0
        %325 = vmatpush1.bf16.msra.mxu0 0
        %326 = vmatprep.subr.bf16.mxu0 0
        %327 = vmatpush1.bf16.msra.mxu0 0
        %328 = vmatprep.subr.bf16.mxu0 0
        %329 = vmatpush1.bf16.msra.mxu0 0
        %330 = vmatprep.mubr.bf16.mxu0 0
        %331 = vmatmul.mubr.bf16.gmra.mrb[0].mxu0 %v296
        %v332 = vpop.f32.mrb[0].mxu0
        %v333 = vadd.f32 %v280, %v332
        %v334 = vpop.f32.mrb[0].mxu0
        %v335 = vpop.f32.mrb[0].mxu0
        %v336 = vpop.f32.mrb[0].mxu0
        %337 = vdwg.mxu0
        %v338 = vmul.f32 %v333, 0.35355338
        %340 = vrot.lane.b32.xlu0 %v338, 120
        %v341 = vpop.permute.xlu0 %340
        %343 = vrot.lane.b32.xlu0 %v338, 112
        %v344 = vpop.permute.xlu0 %343
        %346 = vrot.lane.b32.xlu0 %v338, 104
        %v347 = vpop.permute.xlu0 %346
        %v349 = vcombine.low %v338, %v344
        %v350 = vcombine.high %v338, %v344
        %v352 = vunpack.c.l.s4 1983009808
        %v353 = vunpack.c.0.s8 %v352
        %v354 = vlaneseq
        %v355 = vshrl.u32 %v354, 7
        %v356 = vsub.s32 %v353, %v355
        %v357 = vrot.slane %v349, %v356
        %v359 = vunpack.c.l.s4 1983009808
        %v360 = vunpack.c.0.s8 %v359
        %v361 = vlaneseq
        %v362 = vshrl.u32 %v361, 7
        %v363 = vsub.s32 %v360, %v362
        %v364 = vrot.slane %v350, %v363
        %v365 = vcombine.low %v341, %v347
        %v366 = vcombine.high %v341, %v347
        %v368 = vunpack.c.l.s4 1983009808
        %v369 = vunpack.c.0.s8 %v368
        %v370 = vlaneseq
        %v371 = vshrl.u32 %v370, 7
        %v372 = vsub.s32 %v369, %v371
        %v373 = vrot.slane %v365, %v372
        %v375 = vunpack.c.l.s4 1983009808
        %v376 = vunpack.c.0.s8 %v375
        %v377 = vlaneseq
        %v378 = vshrl.u32 %v377, 7
        %v379 = vsub.s32 %v376, %v378
        %v380 = vrot.slane %v366, %v379
        %v381 = vcombine.low %v357, %v373
        %v382 = vcombine.high %v357, %v373
        %v384 = vunpack.c.l.s4 1934713408
        %v385 = vunpack.c.0.s8 %v384
        %v386 = vlaneseq
        %v387 = vshrl.u32 %v386, 7
        %v388 = vsub.s32 %v385, %v387
        %v389 = vrot.slane %v381, %v388
        %v391 = vunpack.c.l.s4 1934713408
        %v392 = vunpack.c.0.s8 %v391
        %v393 = vlaneseq
        %v394 = vshrl.u32 %v393, 7
        %v395 = vsub.s32 %v392, %v394
        %v396 = vrot.slane %v382, %v395
        %v397 = vcombine.low %v364, %v380
        %v398 = vcombine.high %v364, %v380
        %v400 = vunpack.c.l.s4 1934713408
        %v401 = vunpack.c.0.s8 %v400
        %v402 = vlaneseq
        %v403 = vshrl.u32 %v402, 7
        %v404 = vsub.s32 %v401, %v403
        %v405 = vrot.slane %v397, %v404
        %v407 = vunpack.c.l.s4 1934713408
        %v408 = vunpack.c.0.s8 %v407
        %v409 = vlaneseq
        %v410 = vshrl.u32 %v409, 7
        %v411 = vsub.s32 %v408, %v410
        %v412 = vrot.slane %v398, %v411
        %v413 = vcombine.high %v389, 0.0
        %v414 = vcombine.high %v396, 0.0
        %v415 = vcombine.high %v405, 0.0
        %v416 = vcombine.high %v412, 0.0
        %v417 = vcombine.low %v389, %v396
        %v419 = vunpack.c.l.s4 1983009808
        %v420 = vunpack.c.0.s8 %v419
        %v421 = vlaneseq
        %v422 = vshrl.u32 %v421, 7
        %v423 = vsub.s32 %v420, %v422
        %v424 = vrot.slane %v417, %v423
        %v425 = vcombine.low %v413, %v414
        %v427 = vunpack.c.l.s4 1983009808
        %v428 = vunpack.c.0.s8 %v427
        %v429 = vlaneseq
        %v430 = vshrl.u32 %v429, 7
        %v431 = vsub.s32 %v428, %v430
        %v432 = vrot.slane %v425, %v431
        %v433 = vcombine.low %v405, %v412
        %v435 = vunpack.c.l.s4 1983009808
        %v436 = vunpack.c.0.s8 %v435
        %v437 = vlaneseq
        %v438 = vshrl.u32 %v437, 7
        %v439 = vsub.s32 %v436, %v438
        %v440 = vrot.slane %v433, %v439
        %v441 = vcombine.low %v415, %v416
        %v443 = vunpack.c.l.s4 1983009808
        %v444 = vunpack.c.0.s8 %v443
        %v445 = vlaneseq
        %v446 = vshrl.u32 %v445, 7
        %v447 = vsub.s32 %v444, %v446
        %v448 = vrot.slane %v441, %v447
        %v449 = vcombine.low %v424, %v432
        %v450 = vcombine.high %v424, %v432
        %v452 = vunpack.c.l.s4 1934713408
        %v453 = vunpack.c.0.s8 %v452
        %v454 = vlaneseq
        %v455 = vshrl.u32 %v454, 7
        %v456 = vsub.s32 %v453, %v455
        %v457 = vrot.slane %v449, %v456
        %v459 = vunpack.c.l.s4 1934713408
        %v460 = vunpack.c.0.s8 %v459
        %v461 = vlaneseq
        %v462 = vshrl.u32 %v461, 7
        %v463 = vsub.s32 %v460, %v462
        %v464 = vrot.slane %v450, %v463
        %v465 = vcombine.low %v440, %v448
        %v466 = vcombine.high %v440, %v448
        %v468 = vunpack.c.l.s4 1934713408
        %v469 = vunpack.c.0.s8 %v468
        %v470 = vlaneseq
        %v471 = vshrl.u32 %v470, 7
        %v472 = vsub.s32 %v469, %v471
        %v473 = vrot.slane %v465, %v472
        %v475 = vunpack.c.l.s4 1934713408
        %v476 = vunpack.c.0.s8 %v475
        %v477 = vlaneseq
        %v478 = vshrl.u32 %v477, 7
        %v479 = vsub.s32 %v476, %v478
        %v480 = vrot.slane %v466, %v479
        %v481 = vcombine.low %v457, %v473
        %v482 = vcombine.high %v457, %v473
        %v483 = vcombine.low %v464, %v480
        %v484 = vcombine.high %v464, %v480
        %486 = vrot.lane.b32.xlu0 %v333, 120
        %v487 = vpop.permute.xlu0 %486
        %488 = vrot.lane.b32.xlu0 %v333, 112
        %v489 = vpop.permute.xlu0 %488
        %490 = vrot.lane.b32.xlu0 %v333, 104
        %v491 = vpop.permute.xlu0 %490
        %492 = vrot.lane.b32.xlu0 %v333, 96
        %v493 = vpop.permute.xlu0 %492
        %494 = vrot.lane.b32.xlu0 %v487, 96
        %v495 = vpop.permute.xlu0 %494
        %496 = vrot.lane.b32.xlu0 %v489, 96
        %v497 = vpop.permute.xlu0 %496
        %498 = vrot.lane.b32.xlu0 %v491, 96
        %v499 = vpop.permute.xlu0 %498
        %v504 = vcombine.low %v493, %v497
        %v505 = vcombine.high %v493, %v497
        %v507 = vunpack.c.l.s4 1983009808
        %v508 = vunpack.c.0.s8 %v507
        %v509 = vlaneseq
        %v510 = vshrl.u32 %v509, 7
        %v511 = vsub.s32 %v508, %v510
        %v512 = vrot.slane %v504, %v511
        %v514 = vunpack.c.l.s4 1983009808
        %v515 = vunpack.c.0.s8 %v514
        %v516 = vlaneseq
        %v517 = vshrl.u32 %v516, 7
        %v518 = vsub.s32 %v515, %v517
        %v519 = vrot.slane %v505, %v518
        %v520 = vcombine.low %v495, %v499
        %v521 = vcombine.high %v495, %v499
        %v523 = vunpack.c.l.s4 1983009808
        %v524 = vunpack.c.0.s8 %v523
        %v525 = vlaneseq
        %v526 = vshrl.u32 %v525, 7
        %v527 = vsub.s32 %v524, %v526
        %v528 = vrot.slane %v520, %v527
        %v530 = vunpack.c.l.s4 1983009808
        %v531 = vunpack.c.0.s8 %v530
        %v532 = vlaneseq
        %v533 = vshrl.u32 %v532, 7
        %v534 = vsub.s32 %v531, %v533
        %v535 = vrot.slane %v521, %v534
        %v536 = vcombine.low %v512, %v528
        %v537 = vcombine.high %v512, %v528
        %v539 = vunpack.c.l.s4 1934713408
        %v540 = vunpack.c.0.s8 %v539
        %v541 = vlaneseq
        %v542 = vshrl.u32 %v541, 7
        %v543 = vsub.s32 %v540, %v542
        %v544 = vrot.slane %v536, %v543
        %v546 = vunpack.c.l.s4 1934713408
        %v547 = vunpack.c.0.s8 %v546
        %v548 = vlaneseq
        %v549 = vshrl.u32 %v548, 7
        %v550 = vsub.s32 %v547, %v549
        %v551 = vrot.slane %v537, %v550
        %v552 = vcombine.low %v519, %v535
        %v553 = vcombine.high %v519, %v535
        %v555 = vunpack.c.l.s4 1934713408
        %v556 = vunpack.c.0.s8 %v555
        %v557 = vlaneseq
        %v558 = vshrl.u32 %v557, 7
        %v559 = vsub.s32 %v556, %v558
        %v560 = vrot.slane %v552, %v559
        %v562 = vunpack.c.l.s4 1934713408
        %v563 = vunpack.c.0.s8 %v562
        %v564 = vlaneseq
        %v565 = vshrl.u32 %v564, 7
        %v566 = vsub.s32 %v563, %v565
        %v567 = vrot.slane %v553, %v566
        %v568 = vcombine.high %v544, 0.0
        %v569 = vcombine.high %v551, 0.0
        %v570 = vcombine.high %v560, 0.0
        %v571 = vcombine.high %v567, 0.0
        %v572 = vcombine.low %v544, %v551
        %v574 = vunpack.c.l.s4 1983009808
        %v575 = vunpack.c.0.s8 %v574
        %v576 = vlaneseq
        %v577 = vshrl.u32 %v576, 7
        %v578 = vsub.s32 %v575, %v577
        %v579 = vrot.slane %v572, %v578
        %v580 = vcombine.low %v568, %v569
        %v582 = vunpack.c.l.s4 1983009808
        %v583 = vunpack.c.0.s8 %v582
        %v584 = vlaneseq
        %v585 = vshrl.u32 %v584, 7
        %v586 = vsub.s32 %v583, %v585
        %v587 = vrot.slane %v580, %v586
        %v588 = vcombine.low %v560, %v567
        %v590 = vunpack.c.l.s4 1983009808
        %v591 = vunpack.c.0.s8 %v590
        %v592 = vlaneseq
        %v593 = vshrl.u32 %v592, 7
        %v594 = vsub.s32 %v591, %v593
        %v595 = vrot.slane %v588, %v594
        %v596 = vcombine.low %v570, %v571
        %v598 = vunpack.c.l.s4 1983009808
        %v599 = vunpack.c.0.s8 %v598
        %v600 = vlaneseq
        %v601 = vshrl.u32 %v600, 7
        %v602 = vsub.s32 %v599, %v601
        %v603 = vrot.slane %v596, %v602
        %v604 = vcombine.low %v579, %v587
        %v605 = vcombine.high %v579, %v587
        %v607 = vunpack.c.l.s4 1934713408
        %v608 = vunpack.c.0.s8 %v607
        %v609 = vlaneseq
        %v610 = vshrl.u32 %v609, 7
        %v611 = vsub.s32 %v608, %v610
        %v612 = vrot.slane %v604, %v611
        %v614 = vunpack.c.l.s4 1934713408
        %v615 = vunpack.c.0.s8 %v614
        %v616 = vlaneseq
        %v617 = vshrl.u32 %v616, 7
        %v618 = vsub.s32 %v615, %v617
        %v619 = vrot.slane %v605, %v618
        %v620 = vcombine.low %v595, %v603
        %v621 = vcombine.high %v595, %v603
        %v623 = vunpack.c.l.s4 1934713408
        %v624 = vunpack.c.0.s8 %v623
        %v625 = vlaneseq
        %v626 = vshrl.u32 %v625, 7
        %v627 = vsub.s32 %v624, %v626
        %v628 = vrot.slane %v620, %v627
        %v630 = vunpack.c.l.s4 1934713408
        %v631 = vunpack.c.0.s8 %v630
        %v632 = vlaneseq
        %v633 = vshrl.u32 %v632, 7
        %v634 = vsub.s32 %v631, %v633
        %v635 = vrot.slane %v621, %v634
        %v636 = vcombine.low %v612, %v628
        %v637 = vcombine.high %v612, %v628
        %v638 = vcombine.low %v619, %v635
        %v639 = vcombine.high %v619, %v635
        %640 = vrot.lane.b32.xlu0 %v333, 64
        %v641 = vpop.permute.xlu0 %640
        %642 = vrot.lane.b32.xlu0 %v487, 64
        %v643 = vpop.permute.xlu0 %642
        %644 = vrot.lane.b32.xlu0 %v489, 64
        %v645 = vpop.permute.xlu0 %644
        %646 = vrot.lane.b32.xlu0 %v491, 64
        %v647 = vpop.permute.xlu0 %646
        %v652 = vcombine.low %v641, %v645
        %v653 = vcombine.high %v641, %v645
        %v655 = vunpack.c.l.s4 1983009808
        %v656 = vunpack.c.0.s8 %v655
        %v657 = vlaneseq
        %v658 = vshrl.u32 %v657, 7
        %v659 = vsub.s32 %v656, %v658
        %v660 = vrot.slane %v652, %v659
        %v662 = vunpack.c.l.s4 1983009808
        %v663 = vunpack.c.0.s8 %v662
        %v664 = vlaneseq
        %v665 = vshrl.u32 %v664, 7
        %v666 = vsub.s32 %v663, %v665
        %v667 = vrot.slane %v653, %v666
        %v668 = vcombine.low %v643, %v647
        %v669 = vcombine.high %v643, %v647
        %v671 = vunpack.c.l.s4 1983009808
        %v672 = vunpack.c.0.s8 %v671
        %v673 = vlaneseq
        %v674 = vshrl.u32 %v673, 7
        %v675 = vsub.s32 %v672, %v674
        %v676 = vrot.slane %v668, %v675
        %v678 = vunpack.c.l.s4 1983009808
        %v679 = vunpack.c.0.s8 %v678
        %v680 = vlaneseq
        %v681 = vshrl.u32 %v680, 7
        %v682 = vsub.s32 %v679, %v681
        %v683 = vrot.slane %v669, %v682
        %v684 = vcombine.low %v660, %v676
        %v685 = vcombine.high %v660, %v676
        %v687 = vunpack.c.l.s4 1934713408
        %v688 = vunpack.c.0.s8 %v687
        %v689 = vlaneseq
        %v690 = vshrl.u32 %v689, 7
        %v691 = vsub.s32 %v688, %v690
        %v692 = vrot.slane %v684, %v691
        %v694 = vunpack.c.l.s4 1934713408
        %v695 = vunpack.c.0.s8 %v694
        %v696 = vlaneseq
        %v697 = vshrl.u32 %v696, 7
        %v698 = vsub.s32 %v695, %v697
        %v699 = vrot.slane %v685, %v698
        %v700 = vcombine.low %v667, %v683
        %v701 = vcombine.high %v667, %v683
        %v703 = vunpack.c.l.s4 1934713408
        %v704 = vunpack.c.0.s8 %v703
        %v705 = vlaneseq
        %v706 = vshrl.u32 %v705, 7
        %v707 = vsub.s32 %v704, %v706
        %v708 = vrot.slane %v700, %v707
        %v710 = vunpack.c.l.s4 1934713408
        %v711 = vunpack.c.0.s8 %v710
        %v712 = vlaneseq
        %v713 = vshrl.u32 %v712, 7
        %v714 = vsub.s32 %v711, %v713
        %v715 = vrot.slane %v701, %v714
        %v716 = vcombine.high %v692, 0.0
        %v717 = vcombine.high %v699, 0.0
        %v718 = vcombine.high %v708, 0.0
        %v719 = vcombine.high %v715, 0.0
        %v720 = vcombine.low %v692, %v699
        %v722 = vunpack.c.l.s4 1983009808
        %v723 = vunpack.c.0.s8 %v722
        %v724 = vlaneseq
        %v725 = vshrl.u32 %v724, 7
        %v726 = vsub.s32 %v723, %v725
        %v727 = vrot.slane %v720, %v726
        %v728 = vcombine.low %v716, %v717
        %v730 = vunpack.c.l.s4 1983009808
        %v731 = vunpack.c.0.s8 %v730
        %v732 = vlaneseq
        %v733 = vshrl.u32 %v732, 7
        %v734 = vsub.s32 %v731, %v733
        %v735 = vrot.slane %v728, %v734
        %v736 = vcombine.low %v708, %v715
        %v738 = vunpack.c.l.s4 1983009808
        %v739 = vunpack.c.0.s8 %v738
        %v740 = vlaneseq
        %v741 = vshrl.u32 %v740, 7
        %v742 = vsub.s32 %v739, %v741
        %v743 = vrot.slane %v736, %v742
        %v744 = vcombine.low %v718, %v719
        %v746 = vunpack.c.l.s4 1983009808
        %v747 = vunpack.c.0.s8 %v746
        %v748 = vlaneseq
        %v749 = vshrl.u32 %v748, 7
        %v750 = vsub.s32 %v747, %v749
        %v751 = vrot.slane %v744, %v750
        %v752 = vcombine.low %v727, %v735
        %v753 = vcombine.high %v727, %v735
        %v755 = vunpack.c.l.s4 1934713408
        %v756 = vunpack.c.0.s8 %v755
        %v757 = vlaneseq
        %v758 = vshrl.u32 %v757, 7
        %v759 = vsub.s32 %v756, %v758
        %v760 = vrot.slane %v752, %v759
        %v762 = vunpack.c.l.s4 1934713408
        %v763 = vunpack.c.0.s8 %v762
        %v764 = vlaneseq
        %v765 = vshrl.u32 %v764, 7
        %v766 = vsub.s32 %v763, %v765
        %v767 = vrot.slane %v753, %v766
        %v768 = vcombine.low %v743, %v751
        %v769 = vcombine.high %v743, %v751
        %v771 = vunpack.c.l.s4 1934713408
        %v772 = vunpack.c.0.s8 %v771
        %v773 = vlaneseq
        %v774 = vshrl.u32 %v773, 7
        %v775 = vsub.s32 %v772, %v774
        %v776 = vrot.slane %v768, %v775
        %v778 = vunpack.c.l.s4 1934713408
        %v779 = vunpack.c.0.s8 %v778
        %v780 = vlaneseq
        %v781 = vshrl.u32 %v780, 7
        %v782 = vsub.s32 %v779, %v781
        %v783 = vrot.slane %v769, %v782
        %v784 = vcombine.low %v760, %v776
        %v785 = vcombine.high %v760, %v776
        %v786 = vcombine.low %v767, %v783
        %v787 = vcombine.high %v767, %v783
        %v788 = vpack.c.bf16 %v481, %v481
        %v789 = vpack.c.bf16 %v482, %v482
        %v790 = vpack.c.bf16 %v483, %v483
        %v791 = vpack.c.bf16 %v484, %v484
        %v792 = vpack.c.bf16 %v636, %v636
        %v793 = vpack.c.bf16 %v637, %v637
        %v794 = vpack.c.bf16 %v638, %v638
        %v795 = vpack.c.bf16 %v639, %v639
        %vm796 = vcmask 64512
        %v798 = vsel %vm796, %v788, 0
        %v801 = vsel %vm796, %v792, 0
        %803 = vmatprep.subr.bf16.mxu0 0
        %804 = vmatpush1.bf16.xpose.msra.mxu0 %v801
        %805 = vmatprep.subr.bf16.mxu0 0
        %806 = vmatpush1.bf16.xpose.msra.mxu0 0
        %807 = vmatprep.subr.bf16.mxu0 0
        %808 = vmatpush1.bf16.xpose.msra.mxu0 0
        %809 = vmatprep.subr.bf16.mxu0 0
        %810 = vmatpush1.bf16.xpose.msra.mxu0 0
        %811 = vmatprep.subr.bf16.mxu0 0
        %812 = vmatpush1.bf16.xpose.msra.mxu0 0
        %813 = vmatprep.subr.bf16.mxu0 0
        %814 = vmatpush1.bf16.xpose.msra.mxu0 0
        %815 = vmatprep.subr.bf16.mxu0 0
        %816 = vmatpush1.bf16.xpose.msra.mxu0 0
        %817 = vmatprep.subr.bf16.mxu0 0
        %818 = vmatpush1.bf16.xpose.msra.mxu0 0
        %819 = vmatprep.subr.bf16.mxu0 0
        %820 = vmatpush1.bf16.xpose.msra.mxu0 0
        %821 = vmatprep.subr.bf16.mxu0 0
        %822 = vmatpush1.bf16.xpose.msra.mxu0 0
        %823 = vmatprep.subr.bf16.mxu0 0
        %824 = vmatpush1.bf16.xpose.msra.mxu0 0
        %825 = vmatprep.subr.bf16.mxu0 0
        %826 = vmatpush1.bf16.xpose.msra.mxu0 0
        %827 = vmatprep.subr.bf16.mxu0 0
        %828 = vmatpush1.bf16.xpose.msra.mxu0 0
        %829 = vmatprep.subr.bf16.mxu0 0
        %830 = vmatpush1.bf16.xpose.msra.mxu0 0
        %831 = vmatprep.subr.bf16.mxu0 0
        %832 = vmatpush1.bf16.xpose.msra.mxu0 0
        %833 = vmatprep.subr.bf16.mxu0 0
        %834 = vmatpush1.bf16.xpose.msra.mxu0 0
        %835 = vmatprep.mubr.bf16.mxu0 0
        %836 = vmatmul.mubr.bf16.gmra.mrb[0].mxu0 %v798
        %v837 = vpop.f32.mrb[0].mxu0
        %v838 = vadd.f32 0.0, %v837
        %v839 = vpop.f32.mrb[0].mxu0
        %v840 = vpop.f32.mrb[0].mxu0
        %v841 = vpop.f32.mrb[0].mxu0
        %842 = vdwg.mxu0
        %v844 = vsel %vm796, %v789, 0
        %v847 = vsel %vm796, %v793, 0
        %849 = vmatprep.subr.bf16.mxu0 0
        %850 = vmatpush1.bf16.xpose.msra.mxu0 %v847
        %851 = vmatprep.subr.bf16.mxu0 0
        %852 = vmatpush1.bf16.xpose.msra.mxu0 0
        %853 = vmatprep.subr.bf16.mxu0 0
        %854 = vmatpush1.bf16.xpose.msra.mxu0 0
        %855 = vmatprep.subr.bf16.mxu0 0
        %856 = vmatpush1.bf16.xpose.msra.mxu0 0
        %857 = vmatprep.subr.bf16.mxu0 0
        %858 = vmatpush1.bf16.xpose.msra.mxu0 0
        %859 = vmatprep.subr.bf16.mxu0 0
        %860 = vmatpush1.bf16.xpose.msra.mxu0 0
        %861 = vmatprep.subr.bf16.mxu0 0
        %862 = vmatpush1.bf16.xpose.msra.mxu0 0
        %863 = vmatprep.subr.bf16.mxu0 0
        %864 = vmatpush1.bf16.xpose.msra.mxu0 0
        %865 = vmatprep.subr.bf16.mxu0 0
        %866 = vmatpush1.bf16.xpose.msra.mxu0 0
        %867 = vmatprep.subr.bf16.mxu0 0
        %868 = vmatpush1.bf16.xpose.msra.mxu0 0
        %869 = vmatprep.subr.bf16.mxu0 0
        %870 = vmatpush1.bf16.xpose.msra.mxu0 0
        %871 = vmatprep.subr.bf16.mxu0 0
        %872 = vmatpush1.bf16.xpose.msra.mxu0 0
        %873 = vmatprep.subr.bf16.mxu0 0
        %874 = vmatpush1.bf16.xpose.msra.mxu0 0
        %875 = vmatprep.subr.bf16.mxu0 0
        %876 = vmatpush1.bf16.xpose.msra.mxu0 0
        %877 = vmatprep.subr.bf16.mxu0 0
        %878 = vmatpush1.bf16.xpose.msra.mxu0 0
        %879 = vmatprep.subr.bf16.mxu0 0
        %880 = vmatpush1.bf16.xpose.msra.mxu0 0
        %881 = vmatprep.mubr.bf16.mxu0 0
        %882 = vmatmul.mubr.bf16.gmra.mrb[0].mxu0 %v844
        %v883 = vpop.f32.mrb[0].mxu0
        %v884 = vadd.f32 0.0, %v883
        %v885 = vpop.f32.mrb[0].mxu0
        %v886 = vpop.f32.mrb[0].mxu0
        %v887 = vpop.f32.mrb[0].mxu0
        %888 = vdwg.mxu0
        %v890 = vsel %vm796, %v790, 0
        %v893 = vsel %vm796, %v794, 0
        %895 = vmatprep.subr.bf16.mxu0 0
        %896 = vmatpush1.bf16.xpose.msra.mxu0 %v893
        %897 = vmatprep.subr.bf16.mxu0 0
        %898 = vmatpush1.bf16.xpose.msra.mxu0 0
        %899 = vmatprep.subr.bf16.mxu0 0
        %900 = vmatpush1.bf16.xpose.msra.mxu0 0
        %901 = vmatprep.subr.bf16.mxu0 0
        %902 = vmatpush1.bf16.xpose.msra.mxu0 0
        %903 = vmatprep.subr.bf16.mxu0 0
        %904 = vmatpush1.bf16.xpose.msra.mxu0 0
        %905 = vmatprep.subr.bf16.mxu0 0
        %906 = vmatpush1.bf16.xpose.msra.mxu0 0
        %907 = vmatprep.subr.bf16.mxu0 0
        %908 = vmatpush1.bf16.xpose.msra.mxu0 0
        %909 = vmatprep.subr.bf16.mxu0 0
        %910 = vmatpush1.bf16.xpose.msra.mxu0 0
        %911 = vmatprep.subr.bf16.mxu0 0
        %912 = vmatpush1.bf16.xpose.msra.mxu0 0
        %913 = vmatprep.subr.bf16.mxu0 0
        %914 = vmatpush1.bf16.xpose.msra.mxu0 0
        %915 = vmatprep.subr.bf16.mxu0 0
        %916 = vmatpush1.bf16.xpose.msra.mxu0 0
        %917 = vmatprep.subr.bf16.mxu0 0
        %918 = vmatpush1.bf16.xpose.msra.mxu0 0
        %919 = vmatprep.subr.bf16.mxu0 0
        %920 = vmatpush1.bf16.xpose.msra.mxu0 0
        %921 = vmatprep.subr.bf16.mxu0 0
        %922 = vmatpush1.bf16.xpose.msra.mxu0 0
        %923 = vmatprep.subr.bf16.mxu0 0
        %924 = vmatpush1.bf16.xpose.msra.mxu0 0
        %925 = vmatprep.subr.bf16.mxu0 0
        %926 = vmatpush1.bf16.xpose.msra.mxu0 0
        %927 = vmatprep.mubr.bf16.mxu0 0
        %928 = vmatmul.mubr.bf16.gmra.mrb[0].mxu0 %v890
        %v929 = vpop.f32.mrb[0].mxu0
        %v930 = vadd.f32 0.0, %v929
        %v931 = vpop.f32.mrb[0].mxu0
        %v932 = vpop.f32.mrb[0].mxu0
        %v933 = vpop.f32.mrb[0].mxu0
        %934 = vdwg.mxu0
        %v936 = vsel %vm796, %v791, 0
        %v939 = vsel %vm796, %v795, 0
        %941 = vmatprep.subr.bf16.mxu0 0
        %942 = vmatpush1.bf16.xpose.msra.mxu0 %v939
        %943 = vmatprep.subr.bf16.mxu0 0
        %944 = vmatpush1.bf16.xpose.msra.mxu0 0
        %945 = vmatprep.subr.bf16.mxu0 0
        %946 = vmatpush1.bf16.xpose.msra.mxu0 0
        %947 = vmatprep.subr.bf16.mxu0 0
        %948 = vmatpush1.bf16.xpose.msra.mxu0 0
        %949 = vmatprep.subr.bf16.mxu0 0
        %950 = vmatpush1.bf16.xpose.msra.mxu0 0
        %951 = vmatprep.subr.bf16.mxu0 0
        %952 = vmatpush1.bf16.xpose.msra.mxu0 0
        %953 = vmatprep.subr.bf16.mxu0 0
        %954 = vmatpush1.bf16.xpose.msra.mxu0 0
        %955 = vmatprep.subr.bf16.mxu0 0
        %956 = vmatpush1.bf16.xpose.msra.mxu0 0
        %957 = vmatprep.subr.bf16.mxu0 0
        %958 = vmatpush1.bf16.xpose.msra.mxu0 0
        %959 = vmatprep.subr.bf16.mxu0 0
        %960 = vmatpush1.bf16.xpose.msra.mxu0 0
        %961 = vmatprep.subr.bf16.mxu0 0
        %962 = vmatpush1.bf16.xpose.msra.mxu0 0
        %963 = vmatprep.subr.bf16.mxu0 0
        %964 = vmatpush1.bf16.xpose.msra.mxu0 0
        %965 = vmatprep.subr.bf16.mxu0 0
        %966 = vmatpush1.bf16.xpose.msra.mxu0 0
        %967 = vmatprep.subr.bf16.mxu0 0
        %968 = vmatpush1.bf16.xpose.msra.mxu0 0
        %969 = vmatprep.subr.bf16.mxu0 0
        %970 = vmatpush1.bf16.xpose.msra.mxu0 0
        %971 = vmatprep.subr.bf16.mxu0 0
        %972 = vmatpush1.bf16.xpose.msra.mxu0 0
        %973 = vmatprep.mubr.bf16.mxu0 0
        %974 = vmatmul.mubr.bf16.gmra.mrb[0].mxu0 %v936
        %v975 = vpop.f32.mrb[0].mxu0
        %v976 = vadd.f32 0.0, %v975
        %v977 = vpop.f32.mrb[0].mxu0
        %v978 = vpop.f32.mrb[0].mxu0
        %v979 = vpop.f32.mrb[0].mxu0
        %980 = vdwg.mxu0
        %v981 = vlaneseq
        %v982 = vshrl.u32 %v981, 7
        %v983 = vlaneseq
        %v984 = vand.u32 %v983, 127
        %vm985 = vcmp.ge.s32.totalorder %v982, %v984
        %v986 = vsel %vm985, 1, 0
        %vm987 = vcmp.eq.s32.totalorder %v986, 1
        %v988 = vsel %vm987, %v838, -1e+30
        %v989 = vsel %vm987, %v884, -1e+30
        %v990 = vsel %vm987, %v930, -1e+30
        %v991 = vsel %vm987, %v976, -1e+30
        %v992 = vsel %vm796, %v988, -inf
        %993 = vmax.xlane.f32.xlu0 %v992
        %v994 = vpop.xlane.xlu0 %993
        %v995 = vsel %vm796, %v989, -inf
        %996 = vmax.xlane.f32.xlu0 %v995
        %v997 = vpop.xlane.xlu0 %996
        %v998 = vsel %vm796, %v990, -inf
        %999 = vmax.xlane.f32.xlu0 %v998
        %v1000 = vpop.xlane.xlu0 %999
        %v1001 = vsel %vm796, %v991, -inf
        %1002 = vmax.xlane.f32.xlu0 %v1001
        %v1003 = vpop.xlane.xlu0 %1002
        %v1004 = vsub.f32 %v988, %v994
        %v1005 = vsub.f32 %v989, %v997
        %v1006 = vsub.f32 %v990, %v1000
        %v1007 = vsub.f32 %v991, %v1003
        %v1008 = vmul.f32 %v1004, 1.442695
        %v1009 = vpow.pop %v1008
        %v1010 = vmul.f32 %v1005, 1.442695
        %v1011 = vpow.pop %v1010
        %v1012 = vmul.f32 %v1006, 1.442695
        %v1013 = vpow.pop %v1012
        %v1014 = vmul.f32 %v1007, 1.442695
        %v1015 = vpow.pop %v1014
        %v1016 = vsel %vm796, %v1009, 0.0
        %1017 = vadd.xlane.f32.xlu0 %v1016
        %v1018 = vpop.xlane.xlu0 %1017
        %v1019 = vsel %vm796, %v1011, 0.0
        %1020 = vadd.xlane.f32.xlu0 %v1019
        %v1021 = vpop.xlane.xlu0 %1020
        %v1022 = vsel %vm796, %v1013, 0.0
        %1023 = vadd.xlane.f32.xlu0 %v1022
        %v1024 = vpop.xlane.xlu0 %1023
        %v1025 = vsel %vm796, %v1015, 0.0
        %1026 = vadd.xlane.f32.xlu0 %v1025
        %v1027 = vpop.xlane.xlu0 %1026
        %v1028 = vrcp.pop %v1018
        %v1029 = vrcp.pop %v1021
        %v1030 = vrcp.pop %v1024
        %v1031 = vrcp.pop %v1027
        %v1032 = vmul.f32 %v1009, %v1028
        %v1033 = vmul.f32 %v1011, %v1029
        %v1034 = vmul.f32 %v1013, %v1030
        %v1035 = vmul.f32 %v1015, %v1031
        %v1036 = vpack.c.bf16 %v1032, %v1032
        %v1037 = vpack.c.bf16 %v1033, %v1033
        %v1038 = vpack.c.bf16 %v1034, %v1034
        %v1039 = vpack.c.bf16 %v1035, %v1035
        %v1040 = vpack.c.bf16 %v784, %v784
        %v1041 = vpack.c.bf16 %v785, %v785
        %v1042 = vpack.c.bf16 %v786, %v786
        %v1043 = vpack.c.bf16 %v787, %v787
        %v1045 = vsel %vm796, %v1036, 0
        %vm1047 = vcmask 1043456
        %v1049 = vsel %vm1047, %v1040, 0
        %1051 = vmatprep.subr.bf16.mxu0 0
        %1052 = vmatpush1.bf16.msra.mxu0 %v1049
        %1053 = vmatprep.subr.bf16.mxu0 0
        %1054 = vmatpush1.bf16.msra.mxu0 0
        %1055 = vmatprep.subr.bf16.mxu0 0
        %1056 = vmatpush1.bf16.msra.mxu0 0
        %1057 = vmatprep.subr.bf16.mxu0 0
        %1058 = vmatpush1.bf16.msra.mxu0 0
        %1059 = vmatprep.subr.bf16.mxu0 0
        %1060 = vmatpush1.bf16.msra.mxu0 0
        %1061 = vmatprep.subr.bf16.mxu0 0
        %1062 = vmatpush1.bf16.msra.mxu0 0
        %1063 = vmatprep.subr.bf16.mxu0 0
        %1064 = vmatpush1.bf16.msra.mxu0 0
        %1065 = vmatprep.subr.bf16.mxu0 0
        %1066 = vmatpush1.bf16.msra.mxu0 0
        %1067 = vmatprep.subr.bf16.mxu0 0
        %1068 = vmatpush1.bf16.msra.mxu0 0
        %1069 = vmatprep.subr.bf16.mxu0 0
        %1070 = vmatpush1.bf16.msra.mxu0 0
        %1071 = vmatprep.subr.bf16.mxu0 0
        %1072 = vmatpush1.bf16.msra.mxu0 0
        %1073 = vmatprep.subr.bf16.mxu0 0
        %1074 = vmatpush1.bf16.msra.mxu0 0
        %1075 = vmatprep.subr.bf16.mxu0 0
        %1076 = vmatpush1.bf16.msra.mxu0 0
        %1077 = vmatprep.subr.bf16.mxu0 0
        %1078 = vmatpush1.bf16.msra.mxu0 0
        %1079 = vmatprep.subr.bf16.mxu0 0
        %1080 = vmatpush1.bf16.msra.mxu0 0
        %1081 = vmatprep.subr.bf16.mxu0 0
        %1082 = vmatpush1.bf16.msra.mxu0 0
        %1083 = vmatprep.mubr.bf16.mxu0 0
        %1084 = vmatmul.mubr.bf16.gmra.mrb[0].mxu0 %v1045
        %v1085 = vpop.f32.mrb[0].mxu0
        %v1086 = vadd.f32 0.0, %v1085
        %v1087 = vpop.f32.mrb[0].mxu0
        %v1088 = vpop.f32.mrb[0].mxu0
        %v1089 = vpop.f32.mrb[0].mxu0
        %1090 = vdwg.mxu0
        %v1092 = vsel %vm796, %v1037, 0
        %v1095 = vsel %vm1047, %v1041, 0
        %1097 = vmatprep.subr.bf16.mxu0 0
        %1098 = vmatpush1.bf16.msra.mxu0 %v1095
        %1099 = vmatprep.subr.bf16.mxu0 0
        %1100 = vmatpush1.bf16.msra.mxu0 0
        %1101 = vmatprep.subr.bf16.mxu0 0
        %1102 = vmatpush1.bf16.msra.mxu0 0
        %1103 = vmatprep.subr.bf16.mxu0 0
        %1104 = vmatpush1.bf16.msra.mxu0 0
        %1105 = vmatprep.subr.bf16.mxu0 0
        %1106 = vmatpush1.bf16.msra.mxu0 0
        %1107 = vmatprep.subr.bf16.mxu0 0
        %1108 = vmatpush1.bf16.msra.mxu0 0
        %1109 = vmatprep.subr.bf16.mxu0 0
        %1110 = vmatpush1.bf16.msra.mxu0 0
        %1111 = vmatprep.subr.bf16.mxu0 0
        %1112 = vmatpush1.bf16.msra.mxu0 0
        %1113 = vmatprep.subr.bf16.mxu0 0
        %1114 = vmatpush1.bf16.msra.mxu0 0
        %1115 = vmatprep.subr.bf16.mxu0 0
        %1116 = vmatpush1.bf16.msra.mxu0 0
        %1117 = vmatprep.subr.bf16.mxu0 0
        %1118 = vmatpush1.bf16.msra.mxu0 0
        %1119 = vmatprep.subr.bf16.mxu0 0
        %1120 = vmatpush1.bf16.msra.mxu0 0
        %1121 = vmatprep.subr.bf16.mxu0 0
        %1122 = vmatpush1.bf16.msra.mxu0 0
        %1123 = vmatprep.subr.bf16.mxu0 0
        %1124 = vmatpush1.bf16.msra.mxu0 0
        %1125 = vmatprep.subr.bf16.mxu0 0
        %1126 = vmatpush1.bf16.msra.mxu0 0
        %1127 = vmatprep.subr.bf16.mxu0 0
        %1128 = vmatpush1.bf16.msra.mxu0 0
        %1129 = vmatprep.mubr.bf16.mxu0 0
        %1130 = vmatmul.mubr.bf16.gmra.mrb[0].mxu0 %v1092
        %v1131 = vpop.f32.mrb[0].mxu0
        %v1132 = vadd.f32 0.0, %v1131
        %v1133 = vpop.f32.mrb[0].mxu0
        %v1134 = vpop.f32.mrb[0].mxu0
        %v1135 = vpop.f32.mrb[0].mxu0
        %1136 = vdwg.mxu0
        %v1138 = vsel %vm796, %v1038, 0
        %v1141 = vsel %vm1047, %v1042, 0
        %1143 = vmatprep.subr.bf16.mxu0 0
        %1144 = vmatpush1.bf16.msra.mxu0 %v1141
        %1145 = vmatprep.subr.bf16.mxu0 0
        %1146 = vmatpush1.bf16.msra.mxu0 0
        %1147 = vmatprep.subr.bf16.mxu0 0
        %1148 = vmatpush1.bf16.msra.mxu0 0
        %1149 = vmatprep.subr.bf16.mxu0 0
        %1150 = vmatpush1.bf16.msra.mxu0 0
        %1151 = vmatprep.subr.bf16.mxu0 0
        %1152 = vmatpush1.bf16.msra.mxu0 0
        %1153 = vmatprep.subr.bf16.mxu0 0
        %1154 = vmatpush1.bf16.msra.mxu0 0
        %1155 = vmatprep.subr.bf16.mxu0 0
        %1156 = vmatpush1.bf16.msra.mxu0 0
        %1157 = vmatprep.subr.bf16.mxu0 0
        %1158 = vmatpush1.bf16.msra.mxu0 0
        %1159 = vmatprep.subr.bf16.mxu0 0
        %1160 = vmatpush1.bf16.msra.mxu0 0
        %1161 = vmatprep.subr.bf16.mxu0 0
        %1162 = vmatpush1.bf16.msra.mxu0 0
        %1163 = vmatprep.subr.bf16.mxu0 0
        %1164 = vmatpush1.bf16.msra.mxu0 0
        %1165 = vmatprep.subr.bf16.mxu0 0
        %1166 = vmatpush1.bf16.msra.mxu0 0
        %1167 = vmatprep.subr.bf16.mxu0 0
        %1168 = vmatpush1.bf16.msra.mxu0 0
        %1169 = vmatprep.subr.bf16.mxu0 0
        %1170 = vmatpush1.bf16.msra.mxu0 0
        %1171 = vmatprep.subr.bf16.mxu0 0
        %1172 = vmatpush1.bf16.msra.mxu0 0
        %1173 = vmatprep.subr.bf16.mxu0 0
        %1174 = vmatpush1.bf16.msra.mxu0 0
        %1175 = vmatprep.mubr.bf16.mxu0 0
        %1176 = vmatmul.mubr.bf16.gmra.mrb[0].mxu0 %v1138
        %v1177 = vpop.f32.mrb[0].mxu0
        %v1178 = vadd.f32 0.0, %v1177
        %v1179 = vpop.f32.mrb[0].mxu0
        %v1180 = vpop.f32.mrb[0].mxu0
        %v1181 = vpop.f32.mrb[0].mxu0
        %1182 = vdwg.mxu0
        %v1184 = vsel %vm796, %v1039, 0
        %v1187 = vsel %vm1047, %v1043, 0
        %1189 = vmatprep.subr.bf16.mxu0 0
        %1190 = vmatpush1.bf16.msra.mxu0 %v1187
        %1191 = vmatprep.subr.bf16.mxu0 0
        %1192 = vmatpush1.bf16.msra.mxu0 0
        %1193 = vmatprep.subr.bf16.mxu0 0
        %1194 = vmatpush1.bf16.msra.mxu0 0
        %1195 = vmatprep.subr.bf16.mxu0 0
        %1196 = vmatpush1.bf16.msra.mxu0 0
        %1197 = vmatprep.subr.bf16.mxu0 0
        %1198 = vmatpush1.bf16.msra.mxu0 0
        %1199 = vmatprep.subr.bf16.mxu0 0
        %1200 = vmatpush1.bf16.msra.mxu0 0
        %1201 = vmatprep.subr.bf16.mxu0 0
        %1202 = vmatpush1.bf16.msra.mxu0 0
        %1203 = vmatprep.subr.bf16.mxu0 0
        %1204 = vmatpush1.bf16.msra.mxu0 0
        %1205 = vmatprep.subr.bf16.mxu0 0
        %1206 = vmatpush1.bf16.msra.mxu0 0
        %1207 = vmatprep.subr.bf16.mxu0 0
        %1208 = vmatpush1.bf16.msra.mxu0 0
        %1209 = vmatprep.subr.bf16.mxu0 0
        %1210 = vmatpush1.bf16.msra.mxu0 0
        %1211 = vmatprep.subr.bf16.mxu0 0
        %1212 = vmatpush1.bf16.msra.mxu0 0
        %1213 = vmatprep.subr.bf16.mxu0 0
        %1214 = vmatpush1.bf16.msra.mxu0 0
        %1215 = vmatprep.subr.bf16.mxu0 0
        %1216 = vmatpush1.bf16.msra.mxu0 0
        %1217 = vmatprep.subr.bf16.mxu0 0
        %1218 = vmatpush1.bf16.msra.mxu0 0
        %1219 = vmatprep.subr.bf16.mxu0 0
        %1220 = vmatpush1.bf16.msra.mxu0 0
        %1221 = vmatprep.mubr.bf16.mxu0 0
        %1222 = vmatmul.mubr.bf16.gmra.mrb[0].mxu0 %v1184
        %v1223 = vpop.f32.mrb[0].mxu0
        %v1224 = vadd.f32 0.0, %v1223
        %v1225 = vpop.f32.mrb[0].mxu0
        %v1226 = vpop.f32.mrb[0].mxu0
        %v1227 = vpop.f32.mrb[0].mxu0
        %1228 = vdwg.mxu0
        %v1229 = vcombine.low %v1086, %v1178
        %v1230 = vcombine.high %v1086, %v1178
        %v1232 = vunpack.c.l.s4 1983009808
        %v1233 = vunpack.c.0.s8 %v1232
        %v1234 = vlaneseq
        %v1235 = vshrl.u32 %v1234, 7
        %v1236 = vsub.s32 %v1233, %v1235
        %v1237 = vrot.slane %v1229, %v1236
        %v1239 = vunpack.c.l.s4 1983009808
        %v1240 = vunpack.c.0.s8 %v1239
        %v1241 = vlaneseq
        %v1242 = vshrl.u32 %v1241, 7
        %v1243 = vsub.s32 %v1240, %v1242
        %v1244 = vrot.slane %v1230, %v1243
        %v1245 = vcombine.low %v1132, %v1224
        %v1246 = vcombine.high %v1132, %v1224
        %v1248 = vunpack.c.l.s4 1983009808
        %v1249 = vunpack.c.0.s8 %v1248
        %v1250 = vlaneseq
        %v1251 = vshrl.u32 %v1250, 7
        %v1252 = vsub.s32 %v1249, %v1251
        %v1253 = vrot.slane %v1245, %v1252
        %v1255 = vunpack.c.l.s4 1983009808
        %v1256 = vunpack.c.0.s8 %v1255
        %v1257 = vlaneseq
        %v1258 = vshrl.u32 %v1257, 7
        %v1259 = vsub.s32 %v1256, %v1258
        %v1260 = vrot.slane %v1246, %v1259
        %v1261 = vcombine.low %v1237, %v1253
        %v1262 = vcombine.high %v1237, %v1253
        %v1264 = vunpack.c.l.s4 1934713408
        %v1265 = vunpack.c.0.s8 %v1264
        %v1266 = vlaneseq
        %v1267 = vshrl.u32 %v1266, 7
        %v1268 = vsub.s32 %v1265, %v1267
        %v1269 = vrot.slane %v1261, %v1268
        %v1271 = vunpack.c.l.s4 1934713408
        %v1272 = vunpack.c.0.s8 %v1271
        %v1273 = vlaneseq
        %v1274 = vshrl.u32 %v1273, 7
        %v1275 = vsub.s32 %v1272, %v1274
        %v1276 = vrot.slane %v1262, %v1275
        %v1277 = vcombine.low %v1244, %v1260
        %v1278 = vcombine.high %v1244, %v1260
        %v1280 = vunpack.c.l.s4 1934713408
        %v1281 = vunpack.c.0.s8 %v1280
        %v1282 = vlaneseq
        %v1283 = vshrl.u32 %v1282, 7
        %v1284 = vsub.s32 %v1281, %v1283
        %v1285 = vrot.slane %v1277, %v1284
        %v1287 = vunpack.c.l.s4 1934713408
        %v1288 = vunpack.c.0.s8 %v1287
        %v1289 = vlaneseq
        %v1290 = vshrl.u32 %v1289, 7
        %v1291 = vsub.s32 %v1288, %v1290
        %v1292 = vrot.slane %v1278, %v1291
        %v1293 = vcombine.high %v1269, 0.0
        %v1294 = vcombine.high %v1276, 0.0
        %v1295 = vcombine.high %v1285, 0.0
        %v1296 = vcombine.high %v1292, 0.0
        %v1297 = vcombine.low %v1269, %v1276
        %v1299 = vunpack.c.l.s4 1983009808
        %v1300 = vunpack.c.0.s8 %v1299
        %v1301 = vlaneseq
        %v1302 = vshrl.u32 %v1301, 7
        %v1303 = vsub.s32 %v1300, %v1302
        %v1304 = vrot.slane %v1297, %v1303
        %v1305 = vcombine.low %v1293, %v1294
        %v1307 = vunpack.c.l.s4 1983009808
        %v1308 = vunpack.c.0.s8 %v1307
        %v1309 = vlaneseq
        %v1310 = vshrl.u32 %v1309, 7
        %v1311 = vsub.s32 %v1308, %v1310
        %v1312 = vrot.slane %v1305, %v1311
        %v1313 = vcombine.low %v1285, %v1292
        %v1315 = vunpack.c.l.s4 1983009808
        %v1316 = vunpack.c.0.s8 %v1315
        %v1317 = vlaneseq
        %v1318 = vshrl.u32 %v1317, 7
        %v1319 = vsub.s32 %v1316, %v1318
        %v1320 = vrot.slane %v1313, %v1319
        %v1321 = vcombine.low %v1295, %v1296
        %v1323 = vunpack.c.l.s4 1983009808
        %v1324 = vunpack.c.0.s8 %v1323
        %v1325 = vlaneseq
        %v1326 = vshrl.u32 %v1325, 7
        %v1327 = vsub.s32 %v1324, %v1326
        %v1328 = vrot.slane %v1321, %v1327
        %v1329 = vcombine.low %v1304, %v1312
        %v1330 = vcombine.high %v1304, %v1312
        %v1332 = vunpack.c.l.s4 1934713408
        %v1333 = vunpack.c.0.s8 %v1332
        %v1334 = vlaneseq
        %v1335 = vshrl.u32 %v1334, 7
        %v1336 = vsub.s32 %v1333, %v1335
        %v1337 = vrot.slane %v1329, %v1336
        %v1339 = vunpack.c.l.s4 1934713408
        %v1340 = vunpack.c.0.s8 %v1339
        %v1341 = vlaneseq
        %v1342 = vshrl.u32 %v1341, 7
        %v1343 = vsub.s32 %v1340, %v1342
        %v1344 = vrot.slane %v1330, %v1343
        %v1345 = vcombine.low %v1320, %v1328
        %v1346 = vcombine.high %v1320, %v1328
        %v1348 = vunpack.c.l.s4 1934713408
        %v1349 = vunpack.c.0.s8 %v1348
        %v1350 = vlaneseq
        %v1351 = vshrl.u32 %v1350, 7
        %v1352 = vsub.s32 %v1349, %v1351
        %v1353 = vrot.slane %v1345, %v1352
        %v1355 = vunpack.c.l.s4 1934713408
        %v1356 = vunpack.c.0.s8 %v1355
        %v1357 = vlaneseq
        %v1358 = vshrl.u32 %v1357, 7
        %v1359 = vsub.s32 %v1356, %v1358
        %v1360 = vrot.slane %v1346, %v1359
        %v1361 = vcombine.low %v1337, %v1353
        %v1362 = vcombine.high %v1337, %v1353
        %v1363 = vcombine.low %v1344, %v1360
        %v1364 = vcombine.high %v1344, %v1360
        %1366 = vrot.lane.b32.xlu0 %v1362, 8
        %v1367 = vpop.permute.xlu0 %1366
        %1370 = vrot.lane.b32.xlu0 %v1363, 16
        %v1371 = vpop.permute.xlu0 %1370
        %1374 = vrot.lane.b32.xlu0 %v1364, 24
        %v1375 = vpop.permute.xlu0 %1374
        %v1377 = vsel %vm796, %v1361, %v1367
        %vm1378 = vcmask 130048
        %v1379 = vsel %vm1378, %v1377, %v1371
        %vm1380 = vcmask 195584
        %v1381 = vsel %vm1380, %v1379, %v1375
        %v1382 = vpack.c.bf16 %v1381, %v1381
        %v1383 = vld [vmem:[#allocation7] sm:$0xf]
        %v1384 = vld [vmem:[#allocation7 + $0x4] sm:$0xf]
        %v1385 = vld [vmem:[#allocation7 + $0x8] sm:$0xf]
        %v1386 = vld [vmem:[#allocation7 + $0xc] sm:$0xf]
        %v1387 = vld [vmem:[%s4] sm:$0x1]
        %v1389 = vlaneseq
        %v1390 = vshrl.u32 %v1389, 7
        %v1391 = vsub.s32 0, %v1390
        %v1392 = vrot.slane %v1387, %v1391
        %v1398 = vunpack.c.l.b16 %v1383
        %v1399 = vunpack.c.l.b16 %v1384
        %v1400 = vunpack.c.l.b16 %v1385
        %v1401 = vunpack.c.l.b16 %v1386
        %v1402 = vpack.c.b16 %v1399, %v1398
        %v1403 = vpack.c.b16 %v1401, %v1400
        %v1407 = vsel %vm294, %v1382, 0
        %1409 = vmatprep.subr.bf16.mxu0 0
        %1410 = vmatpush1.bf16.msra.mxu0 %v1402
        %1411 = vmatprep.subr.bf16.mxu0 0
        %1412 = vmatpush1.bf16.msra.mxu0 %v1403
        %1413 = vmatprep.subr.bf16.mxu0 0
        %1414 = vmatpush1.bf16.msra.mxu0 0
        %1415 = vmatprep.subr.bf16.mxu0 0
        %1416 = vmatpush1.bf16.msra.mxu0 0
        %1417 = vmatprep.subr.bf16.mxu0 0
        %1418 = vmatpush1.bf16.msra.mxu0 0
        %1419 = vmatprep.subr.bf16.mxu0 0
        %1420 = vmatpush1.bf16.msra.mxu0 0
        %1421 = vmatprep.subr.bf16.mxu0 0
        %1422 = vmatpush1.bf16.msra.mxu0 0
        %1423 = vmatprep.subr.bf16.mxu0 0
        %1424 = vmatpush1.bf16.msra.mxu0 0
        %1425 = vmatprep.subr.bf16.mxu0 0
        %1426 = vmatpush1.bf16.msra.mxu0 0
        %1427 = vmatprep.subr.bf16.mxu0 0
        %1428 = vmatpush1.bf16.msra.mxu0 0
        %1429 = vmatprep.subr.bf16.mxu0 0
        %1430 = vmatpush1.bf16.msra.mxu0 0
        %1431 = vmatprep.subr.bf16.mxu0 0
        %1432 = vmatpush1.bf16.msra.mxu0 0
        %1433 = vmatprep.subr.bf16.mxu0 0
        %1434 = vmatpush1.bf16.msra.mxu0 0
        %1435 = vmatprep.subr.bf16.mxu0 0
        %1436 = vmatpush1.bf16.msra.mxu0 0
        %1437 = vmatprep.subr.bf16.mxu0 0
        %1438 = vmatpush1.bf16.msra.mxu0 0
        %1439 = vmatprep.subr.bf16.mxu0 0
        %1440 = vmatpush1.bf16.msra.mxu0 0
        %1441 = vmatprep.mubr.bf16.mxu0 0
        %1442 = vmatmul.mubr.bf16.gmra.mrb[0].mxu0 %v1407
        %v1443 = vpop.f32.mrb[0].mxu0
        %v1444 = vadd.f32 %v1392, %v1443
        %v1445 = vpop.f32.mrb[0].mxu0
        %v1446 = vpop.f32.mrb[0].mxu0
        %v1447 = vpop.f32.mrb[0].mxu0
        %1448 = vdwg.mxu0
        %1449 = vst.msk [vmem:[%s268] sm:$0xff] %vm294, %v1444
        %s1450 = sand.u32 %s141, 1
        %s1451 = scalar_lea.sflag [#allocation4], %s1450
        %s1452 = sand.u32 %s141, 1
        %s1453 = smul.addr %s1452, 8
        %s1454 = scalar_lea.vmem [#allocation8], %s1453
        // Predicated region
        $region53: #{tpu_custom_call.1} parent=39 // pred_check
          %p1455 = pneg %p151
        $region54: #{tpu_custom_call.1} parent=39 // pred_check_branch
          %1457 = sbr.rel (%p1455) target = $region56
        $region55: #{tpu_custom_call.1} parent=39 // pred_region
          %s1459 = ssub.s32 128, 128
          %1460 = vsyncadd %s1451, %s1459
          %s1461 = smul.addr %s23, 128
          %s1462 = scalar_lea.hbm %s5, %s1461
          %s1464 = sshll.u32 %s1454, 4
          %s1465 = int_to_ptr.vmem [resolvable:$true] %s1464
          %1467 = dma.vmem_to_hbm [thread:$0]  %s1465, 128, %s1462, %s1451
        $region56: #{tpu_custom_call.1} parent=39 // pred_fallthru
          _
      $region40: #{tpu_custom_call.1} parent=5 // pred_fallthru
        _
      %p1468 = scmp.le.s32.totalorder 2, %s18
      // Predicated region
      $region57: #{tpu_custom_call.1} parent=5 // pred_check
        %p1469 = pneg %p1468
      $region58: #{tpu_custom_call.1} parent=5 // pred_check_branch
        %1471 = sbr.rel (%p1469) target = $region60
      $region59: #{tpu_custom_call.1} parent=5 // pred_region
        %s1472 = ssub.s32 %s18, 2
        // Predicated region
        $region61: #{tpu_custom_call.1} parent=59 // pred_check
          %p1473 = pneg %p157
        $region62: #{tpu_custom_call.1} parent=59 // pred_check_branch
          %1475 = sbr.rel (%p1473) target = $region64
        $region63: #{tpu_custom_call.1} parent=59 // pred_region
          %s1476 = sand.u32 %s142, 1
          %s1477 = scalar_lea.sflag [#allocation4], %s1476
          %s1478 = sand.u32 %s142, 1
          %s1479 = smul.addr %s1478, 8
          %s1480 = scalar_lea.vmem [#allocation8], %s1479
          %1481 = dma.done %s1477, 128
        $region64: #{tpu_custom_call.1} parent=59 // pred_fallthru
          _
      $region60: #{tpu_custom_call.1} parent=5 // pred_fallthru
        _
    $region6: #{tpu_custom_call.1} parent=1 // loop_footer
      %s22 = sadd.s32 1, %s18
    $region7: #{tpu_custom_call.1} parent=1 // loop_footer_branch
      %17 = sbr.rel target = $region3
    $region8: #{tpu_custom_call.1} parent=1 // loop_exit
      _
    %1482 = vsyncpa [#allocation3], 1
    %s1483 = scalar_lea.sflag [#allocation3], 1
    %1484 = vsyncpa %s1483, 1
    %1485 = vsyncpa [#allocation6], 1
    %1486 = vsyncpa [#allocation4], 1
    %s1487 = scalar_lea.sflag [#allocation4], 1
    %1488 = vsyncpa %s1487, 1

</llo_original>
